<compile_context>
chip_gen: v5e
topology: v5e:2x2
jax: 0.10.0
libtpu: 0.0.40
codegen_flags: <defaults>
</compile_context>

<pallas_src>
import functools

import jax
import jax.numpy as jnp
from jax.experimental import pallas as pl
from jax.experimental.pallas import tpu as pltpu


def _round_up(n, m):
    return ((n + m - 1) // m) * m


def _generator_kernel(x_ref, w1_ref, b1_ref, w2_ref, b2_ref, o_ref):
    """Fused matmul -> bias -> relu -> matmul -> bias -> relu on one batch tile."""
    x = x_ref[...]  # (TM, F), already in the weight dtype -> fast MXU path

    # block1: relu(x @ W1 + b1)   (W1 pre-transposed to (in, out): no in-kernel .T)
    h = jnp.dot(x, w1_ref[...], preferred_element_type=jnp.float32)
    h = jnp.maximum(h + b1_ref[...].astype(jnp.float32), 0.0)

    # block2: relu(h @ W2 + b2)
    h = h.astype(w2_ref.dtype)
    y = jnp.dot(h, w2_ref[...], preferred_element_type=jnp.float32)
    y = jnp.maximum(y + b2_ref[...].astype(jnp.float32), 0.0)

    o_ref[...] = y.astype(o_ref.dtype)


def prepare_generator_params(w1, b1, w2, b2):
    """One-time parameter prep (hoisted out of the forward).

    Converts PyTorch (out, in) weights to the (in, out) layout the kernel
    consumes and reshapes biases to (1, F). Call once per parameter update and
    reuse across forward calls.
    """
    return (jnp.asarray(w1).T, jnp.asarray(b1).reshape(1, -1),
            jnp.asarray(w2).T, jnp.asarray(b2).reshape(1, -1))


def _vmem_budget_bytes():
    """Physical VMEM with ~25% headroom for compiler scratch / semaphores."""
    try:
        phys = pltpu.get_tpu_info().vmem_capacity_bytes
    except Exception:
        phys = 64 << 20  # conservative fallback (v7x per-core size)
    return (phys * 3) // 4


def generator_forward(x, w1_t, b1_row, w2_t, b2_row, *, max_batch_tile=512):
    """x: (B, F). w*_t: (F, F) in (in, out) layout. b*_row: (1, F)."""
    B, F = x.shape
    w_dtype = w1_t.dtype
    w_itemsize = jnp.dtype(w_dtype).itemsize

    # Explicit dtype policy: run the whole forward in the weight dtype.
    x = x.astype(w_dtype)

    # Sublane packing of the compute dtype (8 rows f32, 16 bf16, 32 int8/fp8).
    sublane = max(8, 32 // w_itemsize)

    budget = _vmem_budget_bytes()
    # Resident weights + biases; constant-index BlockSpecs are still
    # double-buffered by default, so count the 2x factor here.
    weights_bytes = 2 * (2 * F * F + 2 * F) * w_itemsize
    # Per batch row: double-buffered x and out tiles + two f32 intermediates.
    per_row_bytes = 2 * 2 * F * w_itemsize + 2 * F * 4

    if weights_bytes >= budget:
        # TODO(synk): large-F fallback (tile weights over the output-feature dim
        # with an accumulator, or split into two pallas_calls) not implemented;
        # the resident-weight design needs both (F, F) weights to fit VMEM.
        raise NotImplementedError(
            f"feature_size={F} too large for resident-weight kernel "
            f"({weights_bytes} B of weights vs {budget} B VMEM budget)")

    tm_vmem = max(sublane,
                  ((budget - weights_bytes) // per_row_bytes) // sublane * sublane)
    # Keep >= ~4 grid steps for large B so the pipeline overlaps DMA with
    # compute and the "parallel" axis can be split across v7x's TensorCores.
    tm_steps = max(sublane, _round_up(pl.cdiv(B, 4), sublane))
    TM = min(max_batch_tile, tm_vmem, tm_steps)

    # Pad the batch dim only if needed (feature dim is never padded: the block
    # covers the full F, which is legal regardless of the 128-multiple rule).
    Bp = _round_up(B, TM)
    x_in = x if Bp == B else jnp.zeros((Bp, F), x.dtype).at[:B, :].set(x)
    grid_steps = Bp // TM

    # VMEM limit: v5e's default scoped limit is 16 MiB; raise it (within the
    # per-generation budget) whenever the estimate exceeds that.
    est_vmem = weights_bytes + TM * per_row_bytes + (1 << 20)
    vmem_limit = None
    if est_vmem > (16 << 20):
        vmem_limit = int(min(budget, _round_up((est_vmem * 5) // 4, 1 << 20)))

    # Deeper x pipeline in the HBM-bound small-F / many-step regime.
    if F <= 512 and grid_steps >= 4:
        x_spec = pl.BlockSpec((TM, F), lambda i: (i, 0),
                              pipeline_mode=pl.Buffered(3))
    else:
        x_spec = pl.BlockSpec((TM, F), lambda i: (i, 0))

    out_p = pl.pallas_call(
        _generator_kernel,
        out_shape=jax.ShapeDtypeStruct((Bp, F), w_dtype),
        grid_spec=pltpu.PrefetchScalarGridSpec(
            num_scalar_prefetch=0,
            grid=(grid_steps,),
            in_specs=[
                x_spec,                                   # x : streamed per batch tile
                pl.BlockSpec((F, F), lambda i: (0, 0)),   # W1: resident in VMEM
                pl.BlockSpec((1, F), lambda i: (0, 0)),   # b1: resident
                pl.BlockSpec((F, F), lambda i: (0, 0)),   # W2: resident
                pl.BlockSpec((1, F), lambda i: (0, 0)),   # b2: resident
            ],
            out_specs=pl.BlockSpec((TM, F), lambda i: (i, 0)),
        ),
        compiler_params=pltpu.CompilerParams(
            dimension_semantics=("parallel",),
            vmem_limit_bytes=vmem_limit,
        ),
    )(x_in, w1_t, b1_row, w2_t, b2_row)

    return out_p if Bp == B else out_p[:B]


if __name__ == "__main__":
    feature_size = 32
    batch = 8

    key = jax.random.PRNGKey(0)
    x = jax.random.normal(key, (batch, feature_size), dtype=jnp.float32)

    # Deterministic parameter init matching init_type='eye' (identity weights).
    # TODO(synk): PyTorch's default nn.Linear bias init is uniform(-1/sqrt(F),
    # 1/sqrt(F)); zeros are used here for determinism (no checkpoint loaded).
    w1 = jnp.eye(feature_size, dtype=jnp.float32)
    w2 = jnp.eye(feature_size, dtype=jnp.float32)
    b1 = jnp.zeros((feature_size,), dtype=jnp.float32)
    b2 = jnp.zeros((feature_size,), dtype=jnp.float32)

    w1_t, b1_row, w2_t, b2_row = prepare_generator_params(w1, b1, w2, b2)  # once
    fwd = jax.jit(functools.partial(
        generator_forward, w1_t=w1_t, b1_row=b1_row, w2_t=w2_t, b2_row=b2_row))

    out = jax.block_until_ready(fwd(x))

    # Reference (plain JAX) check of the same forward semantics.
    ref = jnp.maximum(x @ w1.T + b1, 0.0)
    ref = jnp.maximum(ref @ w2.T + b2, 0.0)
    assert out.shape == (batch, feature_size)
    assert jnp.allclose(out, ref, atol=1e-5), "mismatch vs reference"

    print("KERNEL_OK")
</pallas_src>

<mosaic_0001>
module attributes {stable_mosaic.version = 11 : i64} {
  func.func @_generator_kernel(%arg0: i32, %arg1: memref<8x32xf32, #tpu.memory_space<vmem>>, %arg2: memref<32x32xf32, #tpu.memory_space<vmem>>, %arg3: memref<1x32xf32, #tpu.memory_space<vmem>>, %arg4: memref<32x32xf32, #tpu.memory_space<vmem>>, %arg5: memref<1x32xf32, #tpu.memory_space<vmem>>, %arg6: memref<8x32xf32, #tpu.memory_space<vmem>>) attributes {dimension_semantics = [#tpu.dimension_semantics<parallel>], iteration_bounds = array<i64: 1>, scalar_prefetch = 0 : i64, scratch_operands = 0 : i64, tpu.core_type = #tpu.core_type<tc>, window_params = [{transform_indices = @transform_0, window_bounds = array<i64: 8, 32>}, {pipeline_mode = #tpu.pipeline_mode<synchronous>, transform_indices = @transform_1, window_bounds = array<i64: 32, 32>}, {pipeline_mode = #tpu.pipeline_mode<synchronous>, transform_indices = @transform_2, window_bounds = array<i64: 1, 32>}, {pipeline_mode = #tpu.pipeline_mode<synchronous>, transform_indices = @transform_3, window_bounds = array<i64: 32, 32>}, {pipeline_mode = #tpu.pipeline_mode<synchronous>, transform_indices = @transform_4, window_bounds = array<i64: 1, 32>}, {transform_indices = @transform_5, window_bounds = array<i64: 8, 32>}]} {
    %c0 = arith.constant 0 : index
    %c0_0 = arith.constant 0 : index
    %0 = vector.load %arg1[%c0, %c0_0] : memref<8x32xf32, #tpu.memory_space<vmem>>, vector<8x32xf32>
    %c0_1 = arith.constant 0 : index
    %c0_2 = arith.constant 0 : index
    %1 = vector.load %arg2[%c0_1, %c0_2] : memref<32x32xf32, #tpu.memory_space<vmem>>, vector<32x32xf32>
    %cst = arith.constant dense<0.000000e+00> : vector<8x32xf32>
    %2 = tpu.matmul %0, %1, %cst {dimension_numbers = #tpu.dot_dimension_numbers<[1], [0], [0], [1], [0, 0, 1, 1], [], []>} : vector<8x32xf32>, vector<32x32xf32>, vector<8x32xf32> -> vector<8x32xf32>
    %c0_3 = arith.constant 0 : index
    %c0_4 = arith.constant 0 : index
    %3 = vector.load %arg3[%c0_3, %c0_4] : memref<1x32xf32, #tpu.memory_space<vmem>>, vector<1x32xf32>
    %4 = vector.broadcast %3 : vector<1x32xf32> to vector<8x32xf32>
    %5 = arith.addf %2, %4 : vector<8x32xf32>
    %cst_5 = arith.constant 0.000000e+00 : f32
    %6 = vector.broadcast %cst_5 : f32 to vector<8x32xf32>
    %7 = arith.maximumf %5, %6 : vector<8x32xf32>
    %c0_6 = arith.constant 0 : index
    %c0_7 = arith.constant 0 : index
    %8 = vector.load %arg4[%c0_6, %c0_7] : memref<32x32xf32, #tpu.memory_space<vmem>>, vector<32x32xf32>
    %cst_8 = arith.constant dense<0.000000e+00> : vector<8x32xf32>
    %9 = tpu.matmul %7, %8, %cst_8 {dimension_numbers = #tpu.dot_dimension_numbers<[1], [0], [0], [1], [0, 0, 1, 1], [], []>} : vector<8x32xf32>, vector<32x32xf32>, vector<8x32xf32> -> vector<8x32xf32>
    %c0_9 = arith.constant 0 : index
    %c0_10 = arith.constant 0 : index
    %10 = vector.load %arg5[%c0_9, %c0_10] : memref<1x32xf32, #tpu.memory_space<vmem>>, vector<1x32xf32>
    %11 = vector.broadcast %10 : vector<1x32xf32> to vector<8x32xf32>
    %12 = arith.addf %9, %11 : vector<8x32xf32>
    %cst_11 = arith.constant 0.000000e+00 : f32
    %13 = vector.broadcast %cst_11 : f32 to vector<8x32xf32>
    %14 = arith.maximumf %12, %13 : vector<8x32xf32>
    %c0_12 = arith.constant 0 : index
    %c0_13 = arith.constant 0 : index
    %15 = vector.load %arg6[%c0_12, %c0_13] : memref<8x32xf32, #tpu.memory_space<vmem>>, vector<8x32xf32>
    tpu.vector_store %arg6[%c0_12, %c0_13], %14 {strides = array<i32>} : memref<8x32xf32, #tpu.memory_space<vmem>>, vector<8x32xf32>,
    return
  }
  func.func @transform_0(%arg0: i32) -> (i32, i32) {
    %c0_i32 = arith.constant 0 : i32
    %c0_i32_0 = arith.constant 0 : i32
    return %arg0, %c0_i32 : i32, i32
  }
  func.func @transform_1(%arg0: i32) -> (i32, i32) {
    %c0_i32 = arith.constant 0 : i32
    %c0_i32_0 = arith.constant 0 : i32
    %c0_i32_1 = arith.constant 0 : i32
    return %c0_i32, %c0_i32_0 : i32, i32
  }
  func.func @transform_2(%arg0: i32) -> (i32, i32) {
    %c0_i32 = arith.constant 0 : i32
    %c0_i32_0 = arith.constant 0 : i32
    %c0_i32_1 = arith.constant 0 : i32
    return %c0_i32, %c0_i32_0 : i32, i32
  }
  func.func @transform_3(%arg0: i32) -> (i32, i32) {
    %c0_i32 = arith.constant 0 : i32
    %c0_i32_0 = arith.constant 0 : i32
    %c0_i32_1 = arith.constant 0 : i32
    return %c0_i32, %c0_i32_0 : i32, i32
  }
  func.func @transform_4(%arg0: i32) -> (i32, i32) {
    %c0_i32 = arith.constant 0 : i32
    %c0_i32_0 = arith.constant 0 : i32
    %c0_i32_1 = arith.constant 0 : i32
    return %c0_i32, %c0_i32_0 : i32, i32
  }
  func.func @transform_5(%arg0: i32) -> (i32, i32) {
    %c0_i32 = arith.constant 0 : i32
    %c0_i32_0 = arith.constant 0 : i32
    return %arg0, %c0_i32 : i32, i32
  }
}

</mosaic_0001>

<llo_original>
// kernel: generator_forward.1
$region0: #{generator_forward.1}
  #allocation0 [shape = 'u32[]', space=smem, size = 0x4, offset = 0x4, fixed_abs, tag = 'smem constant byte address 0x4 - core index']
  #allocation1 [shape = 'u32[72,128]{1,0:T(1,128)}', space=vmem, size = 0x9000, scoped, tag = 'internal scratch']
  %s0 = inlined_call_operand.hbm [shape: f32[8,32], index: 0, kind: input, shape index: {}]
  %s1 = inlined_call_operand.hbm [shape: f32[32,32], index: 1, kind: input, shape index: {}, may-alias: {1,3}]
  %s2 = inlined_call_operand.vmem [shape: f32[1,32], index: 2, kind: input, shape index: {}, may-alias: {2,4}]
  %s3 = inlined_call_operand.hbm [shape: f32[32,32], index: 3, kind: input, shape index: {}, may-alias: {1,3}]
  %s4 = inlined_call_operand.vmem [shape: f32[1,32], index: 4, kind: input, shape index: {}, may-alias: {2,4}]
  %s5 = inlined_call_operand.hbm [shape: f32[8,32], index: 5, kind: output, shape index: {}]
  %s6 = sld [smem:[#allocation0]]
  $region42: #{generator_forward.1} parent=0
    _
  %s8 = ssub.s32 1, %s6
  %s9 = scalar_select 0, %s8, %s6
  $region1: #{generator_forward.1} parent=0
    #allocation2 [shape = 'u8[4096]{0}', space=vmem, size = 0x1000, scoped, tag = 'input window, operand 0, single buffered']
    #allocation3 [shape = 's32[1]{0}', space=sflag, size = 0x4, scoped, tag = 'scoped memory for generator_forward.1']
    #allocation4 [shape = 's32[1]{0}', space=sflag, size = 0x4, scoped, tag = 'scoped memory for generator_forward.1']
    #allocation5 [shape = 'u8[16384]{0}', space=vmem, size = 0x4000, scoped, tag = 'input window, operand 1, single buffered']
    #allocation6 [shape = 's32[1]{0}', space=sflag, size = 0x4, scoped, tag = 'scoped memory for generator_forward.1']
    #allocation7 [shape = 'u8[16384]{0}', space=vmem, size = 0x4000, scoped, tag = 'input window, operand 3, single buffered']
    #allocation8 [shape = 'u8[4096]{0}', space=vmem, size = 0x1000, scoped, tag = 'output window, operand 0, single buffered']
    %10 = vsyncpa [#allocation3], 0
    %11 = vsyncpa [#allocation6], 0
    %12 = vsyncpa [#allocation4], 0
    // Predicated region
    $region2: #{generator_forward.1} parent=1 // pred_check
      _
    $region3: #{generator_forward.1} parent=1 // pred_check_branch
      %14 = sbr.rel (0) target = $region5
    $region4: #{generator_forward.1} parent=1 // pred_region
      %16 = vsyncadd [#allocation3], 0
      %s18 = sshll.u32 %s0, 4
      %s19 = int_to_ptr.hbm [resolvable:$true] %s18
      %s20 = sshll.u32 [#allocation2], 4
      %s21 = int_to_ptr.vmem [resolvable:$true] %s20
      %23 = dma.hbm_to_vmem [thread:$0]  %s19, 128, %s21, [#allocation3]
    $region5: #{generator_forward.1} parent=1 // pred_fallthru
      _
    // Predicated region
    $region6: #{generator_forward.1} parent=1 // pred_check
      _
    $region7: #{generator_forward.1} parent=1 // pred_check_branch
      %25 = sbr.rel (0) target = $region9
    $region8: #{generator_forward.1} parent=1 // pred_region
      %27 = vsyncadd [#allocation6], 0
      %s28 = sshll.u32 %s1, 4
      %s29 = int_to_ptr.hbm [resolvable:$true] %s28
      %s30 = sshll.u32 [#allocation5], 4
      %s31 = int_to_ptr.vmem [resolvable:$true] %s30
      %36 = dma.hbm_to_vmem [thread:$0]  %s29, 512, %s31, [#allocation6], 128, 128, 8
    $region9: #{generator_forward.1} parent=1 // pred_fallthru
      _
    // Predicated region
    $region10: #{generator_forward.1} parent=1 // pred_check
      _
    $region11: #{generator_forward.1} parent=1 // pred_check_branch
      %38 = sbr.rel (0) target = $region13
    $region12: #{generator_forward.1} parent=1 // pred_region
      _
    $region13: #{generator_forward.1} parent=1 // pred_fallthru
      _
    // Predicated region
    $region14: #{generator_forward.1} parent=1 // pred_check
      _
    $region15: #{generator_forward.1} parent=1 // pred_check_branch
      %40 = sbr.rel (0) target = $region17
    $region16: #{generator_forward.1} parent=1 // pred_region
      %42 = vsyncadd [#allocation6], 0
      %s43 = sshll.u32 %s3, 4
      %s44 = int_to_ptr.hbm [resolvable:$true] %s43
      %s45 = sshll.u32 [#allocation7], 4
      %s46 = int_to_ptr.vmem [resolvable:$true] %s45
      %51 = dma.hbm_to_vmem [thread:$0]  %s44, 512, %s46, [#allocation6], 128, 128, 8
    $region17: #{generator_forward.1} parent=1 // pred_fallthru
      _
    // Predicated region
    $region18: #{generator_forward.1} parent=1 // pred_check
      _
    $region19: #{generator_forward.1} parent=1 // pred_check_branch
      %53 = sbr.rel (0) target = $region21
    $region20: #{generator_forward.1} parent=1 // pred_region
      _
    $region21: #{generator_forward.1} parent=1 // pred_fallthru
      _
    // Predicated region
    $region22: #{generator_forward.1} parent=1 // pred_check
      _
    $region23: #{generator_forward.1} parent=1 // pred_check_branch
      %55 = sbr.rel (0) target = $region25
    $region24: #{generator_forward.1} parent=1 // pred_region
      %57 = dma.done [#allocation3], 128
    $region25: #{generator_forward.1} parent=1 // pred_fallthru
      _
    // Predicated region
    $region26: #{generator_forward.1} parent=1 // pred_check
      _
    $region27: #{generator_forward.1} parent=1 // pred_check_branch
      %59 = sbr.rel (0) target = $region29
    $region28: #{generator_forward.1} parent=1 // pred_region
      %61 = dma.done [#allocation6], 512
    $region29: #{generator_forward.1} parent=1 // pred_fallthru
      _
    // Predicated region
    $region30: #{generator_forward.1} parent=1 // pred_check
      _
    $region31: #{generator_forward.1} parent=1 // pred_check_branch
      %63 = sbr.rel (0) target = $region33
    $region32: #{generator_forward.1} parent=1 // pred_region
      %65 = dma.done [#allocation6], 512
    $region33: #{generator_forward.1} parent=1 // pred_fallthru
      _
    %v66 = vld [vmem:[#allocation2] sm:$0xff]
    %v67 = vld [vmem:[#allocation5] sm:$0xff]
    %v68 = vld [vmem:[#allocation5 + $0x8] sm:$0xff]
    %v69 = vld [vmem:[#allocation5 + $0x10] sm:$0xff]
    %v70 = vld [vmem:[#allocation5 + $0x18] sm:$0xff]
    %v71 = vld [vmem:[%s2] sm:$0x1]
    %v73 = vperm.slane %v71, 0
    %vm75 = vcmask 261120
    %v77 = vsel %vm75, %v66, 0
    %79 = vmatpush.msra.mxu0 0.0
    %80 = vmatpush.msra.mxu0 0.0
    %81 = vmatpush.msra.mxu0 0.0
    %82 = vmatpush.msra.mxu0 0.0
    %83 = vmatpush.msra.mxu0 0.0
    %84 = vmatpush.msra.mxu0 0.0
    %85 = vmatpush.msra.mxu0 0.0
    %86 = vmatpush.msra.mxu0 0.0
    %87 = vmatpush.msra.mxu0 0.0
    %88 = vmatpush.msra.mxu0 0.0
    %89 = vmatpush.msra.mxu0 0.0
    %90 = vmatpush.msra.mxu0 0.0
    %91 = vmatpush.msra.mxu0 %v70
    %92 = vmatpush.msra.mxu0 %v69
    %93 = vmatpush.msra.mxu0 %v68
    %94 = vmatpush.msra.mxu0 %v67
    %95 = vmatmul.f32.gmra.mxu0 %v77
    %v96 = vpop.f32.mrf.mxu0
    %v97 = vadd.f32 %v73, %v96
    %98 = vdwg.mxu0
    %v99 = vmax.f32 %v97, 0.0
    %v100 = vld [vmem:[#allocation7] sm:$0xff]
    %v101 = vld [vmem:[#allocation7 + $0x8] sm:$0xff]
    %v102 = vld [vmem:[#allocation7 + $0x10] sm:$0xff]
    %v103 = vld [vmem:[#allocation7 + $0x18] sm:$0xff]
    %v104 = vld [vmem:[%s4] sm:$0x1]
    %v106 = vperm.slane %v104, 0
    %v109 = vsel %vm75, %v99, 0
    %111 = vmatpush.msra.mxu0 0.0
    %112 = vmatpush.msra.mxu0 0.0
    %113 = vmatpush.msra.mxu0 0.0
    %114 = vmatpush.msra.mxu0 0.0
    %115 = vmatpush.msra.mxu0 0.0
    %116 = vmatpush.msra.mxu0 0.0
    %117 = vmatpush.msra.mxu0 0.0
    %118 = vmatpush.msra.mxu0 0.0
    %119 = vmatpush.msra.mxu0 0.0
    %120 = vmatpush.msra.mxu0 0.0
    %121 = vmatpush.msra.mxu0 0.0
    %122 = vmatpush.msra.mxu0 0.0
    %123 = vmatpush.msra.mxu0 %v103
    %124 = vmatpush.msra.mxu0 %v102
    %125 = vmatpush.msra.mxu0 %v101
    %126 = vmatpush.msra.mxu0 %v100
    %127 = vmatmul.f32.gmra.mxu0 %v109
    %v128 = vpop.f32.mrf.mxu0
    %v129 = vadd.f32 %v106, %v128
    %130 = vdwg.mxu0
    %v131 = vmax.f32 %v129, 0.0
    %132 = vst.msk [vmem:[#allocation8] sm:$0xff] %vm75, %v131
    // Predicated region
    $region34: #{generator_forward.1} parent=1 // pred_check
      _
    $region35: #{generator_forward.1} parent=1 // pred_check_branch
      %134 = sbr.rel (0) target = $region37
    $region36: #{generator_forward.1} parent=1 // pred_region
      %136 = vsyncadd [#allocation4], 0
      %s138 = sshll.u32 [#allocation8], 4
      %s139 = int_to_ptr.vmem [resolvable:$true] %s138
      %s140 = sshll.u32 %s5, 4
      %s141 = int_to_ptr.hbm [resolvable:$true] %s140
      %143 = dma.vmem_to_hbm [thread:$0]  %s139, 128, %s141, [#allocation4]
    $region37: #{generator_forward.1} parent=1 // pred_fallthru
      _
    // Predicated region
    $region38: #{generator_forward.1} parent=1 // pred_check
      _
    $region39: #{generator_forward.1} parent=1 // pred_check_branch
      %145 = sbr.rel (0) target = $region41
    $region40: #{generator_forward.1} parent=1 // pred_region
      %147 = dma.done [#allocation4], 128
    $region41: #{generator_forward.1} parent=1 // pred_fallthru
      _
    %148 = vsyncpa [#allocation3], 1
    %149 = vsyncpa [#allocation6], 1
    %150 = vsyncpa [#allocation4], 1

</llo_original>
